<compile_context>
chip_gen: v6e
topology: v6e:2x2x1
jax: 0.10.0
libtpu: 0.0.40
codegen_flags: <defaults>
</compile_context>

<pallas_src>
import jax
import jax.numpy as jnp
from jax import lax
from jax.experimental import pallas as pl
from jax.experimental.pallas import tpu as pltpu


def mlp_softmax_kernel(x_ref, w1_ref, b1_ref, w2_ref, b2_ref, w3_ref, b3_ref,
                       o_ref):
    # x_ref: (TB, IN) f32 tile, native row-major layout.
    # Weights: (out, in) bf16 (PyTorch layout).  Biases: (out, 1) f32.
    # Output: (2, TB) f32, batch on the 128-lane axis (lane-dense store).
    xb = x_ref[...].astype(jnp.bfloat16)                         # (TB, IN)

    # hidden layer 1: h = W1 @ x^T + b1  (contract IN of both operands; no
    # explicit transpose needed -- MXU handles the transposed contraction)
    h = lax.dot_general(w1_ref[...], xb, (((1,), (1,)), ((), ())),
                        preferred_element_type=jnp.float32) + b1_ref[...]
    h = jnp.maximum(h, 0.0)                                      # (H1, TB)

    # hidden layer 2: Linear + ReLU
    h = jnp.dot(w2_ref[...], h.astype(jnp.bfloat16),
                preferred_element_type=jnp.float32) + b2_ref[...]
    h = jnp.maximum(h, 0.0)                                      # (H2, TB)

    # output_layer: Linear(10, 2)
    logits = jnp.dot(w3_ref[...], h.astype(jnp.bfloat16),
                     preferred_element_type=jnp.float32) + b3_ref[...]  # (2, TB)

    # Numerically-stable softmax over the 2 classes (axis 0 in this layout).
    # Exact division (not approx reciprocal) so each column sums to 1.
    m = jnp.max(logits, axis=0, keepdims=True)
    e = jnp.exp(logits - m)
    o_ref[...] = e / jnp.sum(e, axis=0, keepdims=True)


def mynet_forward(x, params, *, block_batch=16384):
    """x: (B, IN) float32. params: (w1,b1,w2,b2,w3,b3), w: (out,in), b: (out,1).

    Returns softmax probabilities of shape (B, 2)."""
    w1, b1, w2, b2, w3, b3 = params
    B, IN = x.shape
    H1, H2, OUT = w1.shape[0], w2.shape[0], w3.shape[0]

    LANE = 128
    block_batch = max(LANE, (block_batch // LANE) * LANE)
    # Batch tile on the lane axis: as large as block_batch allows, but capped
    # so the grid has >= 2 steps when the batch permits (v7x: 2 TensorCores).
    n_lanes = pl.cdiv(B, LANE)
    half = pl.cdiv(n_lanes, 2) * LANE
    TB = max(LANE, min(block_batch, half))
    grid = (pl.cdiv(B, TB),)

    # Tiny one-time cast of the resident weights; x itself streams untouched.
    w1b = w1.astype(jnp.bfloat16)
    w2b = w2.astype(jnp.bfloat16)
    w3b = w3.astype(jnp.bfloat16)

    def resident(shape):
        # Whole-array block, same block index every grid step -> VMEM-resident.
        return pl.BlockSpec(shape, lambda i: (0, 0))

    out_t = pl.pallas_call(
        mlp_softmax_kernel,
        out_shape=jax.ShapeDtypeStruct((OUT, B), jnp.float32),
        grid=grid,
        in_specs=[
            pl.BlockSpec((TB, IN), lambda i: (i, 0)),   # streamed x tile (f32)
            resident((H1, IN)), resident((H1, 1)),
            resident((H2, H1)), resident((H2, 1)),
            resident((OUT, H2)), resident((OUT, 1)),
        ],
        out_specs=pl.BlockSpec((OUT, TB), lambda i: (0, i)),  # lane-dense store
        compiler_params=pltpu.CompilerParams(
            dimension_semantics=("parallel",),          # v7x: shard over 2 TCs
            vmem_limit_bytes=32 * 1024 * 1024),
    )(x, w1b, b1, w2b, b2, w3b, b3)

    # If the consumer can take (2, B) f32 directly, return out_t instead and
    # save this small extra HBM pass.
    return out_t.T                                        # (B, 2)


def init_params(key, layers_size_list):
    """Mimic torch.nn.Linear default init U(-1/sqrt(in), 1/sqrt(in)).

    Weights stored in PyTorch layout (out, in); biases as (out, 1)."""
    dims = list(zip(layers_size_list[:-1], layers_size_list[1:])) + [(10, 2)]
    params = []
    for fan_in, fan_out in dims:
        key, kw, kb = jax.random.split(key, 3)
        bound = 1.0 / (fan_in ** 0.5)
        w = jax.random.uniform(kw, (fan_out, fan_in), jnp.float32,
                               minval=-bound, maxval=bound)
        b = jax.random.uniform(kb, (fan_out, 1), jnp.float32,
                               minval=-bound, maxval=bound)
        params += [w, b]
    return params


def reference_forward(x, params):
    """Pure-JAX reference with the same bf16-input / f32-accumulate precision."""
    w1, b1, w2, b2, w3, b3 = params
    xb = x.astype(jnp.bfloat16)
    h = jnp.dot(xb, w1.astype(jnp.bfloat16).T,
                preferred_element_type=jnp.float32) + b1[:, 0]
    h = jnp.maximum(h, 0.0)
    h = jnp.dot(h.astype(jnp.bfloat16), w2.astype(jnp.bfloat16).T,
                preferred_element_type=jnp.float32) + b2[:, 0]
    h = jnp.maximum(h, 0.0)
    logits = jnp.dot(h.astype(jnp.bfloat16), w3.astype(jnp.bfloat16).T,
                     preferred_element_type=jnp.float32) + b3[:, 0]
    return jax.nn.softmax(logits, axis=1)


if __name__ == "__main__":
    key = jax.random.PRNGKey(0)
    # layers_size_list = [32, 16, 10] so the fixed Linear(10, 2) output_layer
    # is shape-consistent with the original module.
    layers_size_list = [32, 16, 10]

    params = init_params(key, layers_size_list)

    # Case 1: batch large enough to exercise multiple grid steps
    # (TB gets capped to 128 -> grid=(2,)).
    key, kx = jax.random.split(key)
    batch = 256
    x = jax.random.normal(kx, (batch, layers_size_list[0]), jnp.float32)
    out = jax.block_until_ready(mynet_forward(x, params))
    ref = reference_forward(x, params)
    assert out.shape == (batch, 2)
    assert jnp.allclose(out, ref, atol=2e-3, rtol=2e-3)
    assert jnp.allclose(jnp.sum(out, axis=1), 1.0, atol=1e-5)

    # Case 2: tiny ragged batch (exercises the partial-block / masked-store path).
    key, kx2 = jax.random.split(key)
    x_small = jax.random.normal(kx2, (8, layers_size_list[0]), jnp.float32)
    out_small = jax.block_until_ready(mynet_forward(x_small, params))
    ref_small = reference_forward(x_small, params)
    assert out_small.shape == (8, 2)
    assert jnp.allclose(out_small, ref_small, atol=2e-3, rtol=2e-3)
    assert jnp.allclose(jnp.sum(out_small, axis=1), 1.0, atol=1e-5)

    print("KERNEL_OK")
</pallas_src>

<mosaic_0001>
module attributes {stable_mosaic.version = 11 : i64} {
  func.func @mlp_softmax_kernel(%arg0: i32, %arg1: memref<128x32xf32, #tpu.memory_space<vmem>>, %arg2: memref<16x32xbf16, #tpu.memory_space<vmem>>, %arg3: memref<16x1xf32, #tpu.memory_space<vmem>>, %arg4: memref<10x16xbf16, #tpu.memory_space<vmem>>, %arg5: memref<10x1xf32, #tpu.memory_space<vmem>>, %arg6: memref<2x10xbf16, #tpu.memory_space<vmem>>, %arg7: memref<2x1xf32, #tpu.memory_space<vmem>>, %arg8: memref<2x128xf32, #tpu.memory_space<vmem>>) attributes {dimension_semantics = [#tpu.dimension_semantics<parallel>], iteration_bounds = array<i64: 2>, scalar_prefetch = 0 : i64, scratch_operands = 0 : i64, tpu.core_type = #tpu.core_type<tc>, window_params = [{transform_indices = @transform_0, window_bounds = array<i64: 128, 32>}, {pipeline_mode = #tpu.pipeline_mode<synchronous>, transform_indices = @transform_1, window_bounds = array<i64: 16, 32>}, {pipeline_mode = #tpu.pipeline_mode<synchronous>, transform_indices = @transform_2, window_bounds = array<i64: 16, 1>}, {pipeline_mode = #tpu.pipeline_mode<synchronous>, transform_indices = @transform_3, window_bounds = array<i64: 10, 16>}, {pipeline_mode = #tpu.pipeline_mode<synchronous>, transform_indices = @transform_4, window_bounds = array<i64: 10, 1>}, {pipeline_mode = #tpu.pipeline_mode<synchronous>, transform_indices = @transform_5, window_bounds = array<i64: 2, 10>}, {pipeline_mode = #tpu.pipeline_mode<synchronous>, transform_indices = @transform_6, window_bounds = array<i64: 2, 1>}, {transform_indices = @transform_7, window_bounds = array<i64: 2, 128>}]} {
    %c0 = arith.constant 0 : index
    %c0_0 = arith.constant 0 : index
    %0 = vector.load %arg1[%c0, %c0_0] : memref<128x32xf32, #tpu.memory_space<vmem>>, vector<128x32xf32>
    %1 = arith.truncf %0 : vector<128x32xf32> to vector<128x32xbf16>
    %c0_1 = arith.constant 0 : index
    %c0_2 = arith.constant 0 : index
    %2 = vector.load %arg2[%c0_1, %c0_2] : memref<16x32xbf16, #tpu.memory_space<vmem>>, vector<16x32xbf16>
    %cst = arith.constant dense<0.000000e+00> : vector<16x128xf32>
    %3 = tpu.matmul %2, %1, %cst {dimension_numbers = #tpu.dot_dimension_numbers<[1], [1], [0], [0], [0, 0, 1, 0], [], []>} : vector<16x32xbf16>, vector<128x32xbf16>, vector<16x128xf32> -> vector<16x128xf32>
    %c0_3 = arith.constant 0 : index
    %c0_4 = arith.constant 0 : index
    %4 = vector.load %arg3[%c0_3, %c0_4] : memref<16x1xf32, #tpu.memory_space<vmem>>, vector<16x1xf32>
    %5 = vector.broadcast %4 : vector<16x1xf32> to vector<16x128xf32>
    %6 = arith.addf %3, %5 : vector<16x128xf32>
    %cst_5 = arith.constant 0.000000e+00 : f32
    %7 = vector.broadcast %cst_5 : f32 to vector<16x128xf32>
    %8 = arith.maximumf %6, %7 : vector<16x128xf32>
    %c0_6 = arith.constant 0 : index
    %c0_7 = arith.constant 0 : index
    %9 = vector.load %arg4[%c0_6, %c0_7] : memref<10x16xbf16, #tpu.memory_space<vmem>>, vector<10x16xbf16>
    %10 = arith.truncf %8 : vector<16x128xf32> to vector<16x128xbf16>
    %cst_8 = arith.constant dense<0.000000e+00> : vector<10x128xf32>
    %11 = tpu.matmul %9, %10, %cst_8 {dimension_numbers = #tpu.dot_dimension_numbers<[1], [0], [0], [1], [0, 0, 1, 1], [], []>} : vector<10x16xbf16>, vector<16x128xbf16>, vector<10x128xf32> -> vector<10x128xf32>
    %c0_9 = arith.constant 0 : index
    %c0_10 = arith.constant 0 : index
    %12 = vector.load %arg5[%c0_9, %c0_10] : memref<10x1xf32, #tpu.memory_space<vmem>>, vector<10x1xf32>
    %13 = vector.broadcast %12 : vector<10x1xf32> to vector<10x128xf32>
    %14 = arith.addf %11, %13 : vector<10x128xf32>
    %cst_11 = arith.constant 0.000000e+00 : f32
    %15 = vector.broadcast %cst_11 : f32 to vector<10x128xf32>
    %16 = arith.maximumf %14, %15 : vector<10x128xf32>
    %c0_12 = arith.constant 0 : index
    %c0_13 = arith.constant 0 : index
    %17 = vector.load %arg6[%c0_12, %c0_13] : memref<2x10xbf16, #tpu.memory_space<vmem>>, vector<2x10xbf16>
    %18 = arith.truncf %16 : vector<10x128xf32> to vector<10x128xbf16>
    %cst_14 = arith.constant dense<0.000000e+00> : vector<2x128xf32>
    %19 = tpu.matmul %17, %18, %cst_14 {dimension_numbers = #tpu.dot_dimension_numbers<[1], [0], [0], [1], [0, 0, 1, 1], [], []>} : vector<2x10xbf16>, vector<10x128xbf16>, vector<2x128xf32> -> vector<2x128xf32>
    %c0_15 = arith.constant 0 : index
    %c0_16 = arith.constant 0 : index
    %20 = vector.load %arg7[%c0_15, %c0_16] : memref<2x1xf32, #tpu.memory_space<vmem>>, vector<2x1xf32>
    %21 = vector.broadcast %20 : vector<2x1xf32> to vector<2x128xf32>
    %22 = arith.addf %19, %21 : vector<2x128xf32>
    %cst_17 = arith.constant dense<0xFF800000> : vector<128xf32>
    %23 = vector.multi_reduction <maximumf>, %22, %cst_17 [0] : vector<2x128xf32> to vector<128xf32>
    %24 = vector.shape_cast %23 : vector<128xf32> to vector<1x128xf32>
    %25 = vector.broadcast %24 : vector<1x128xf32> to vector<2x128xf32>
    %26 = arith.subf %22, %25 : vector<2x128xf32>
    %27 = math.exp %26 : vector<2x128xf32>
    %cst_18 = arith.constant dense<0.000000e+00> : vector<128xf32>
    %28 = vector.multi_reduction <add>, %27, %cst_18 [0] : vector<2x128xf32> to vector<128xf32>
    %29 = vector.shape_cast %28 : vector<128xf32> to vector<1x128xf32>
    %30 = vector.broadcast %29 : vector<1x128xf32> to vector<2x128xf32>
    %31 = arith.divf %27, %30 : vector<2x128xf32>
    %c0_19 = arith.constant 0 : index
    %c0_20 = arith.constant 0 : index
    %32 = vector.load %arg8[%c0_19, %c0_20] : memref<2x128xf32, #tpu.memory_space<vmem>>, vector<2x128xf32>
    tpu.vector_store %arg8[%c0_19, %c0_20], %31 {strides = array<i32>} : memref<2x128xf32, #tpu.memory_space<vmem>>, vector<2x128xf32>,
    return
  }
  func.func @transform_0(%arg0: i32) -> (i32, i32) {
    %c0_i32 = arith.constant 0 : i32
    %c0_i32_0 = arith.constant 0 : i32
    return %arg0, %c0_i32 : i32, i32
  }
  func.func @transform_1(%arg0: i32) -> (i32, i32) {
    %c0_i32 = arith.constant 0 : i32
    %c0_i32_0 = arith.constant 0 : i32
    %c0_i32_1 = arith.constant 0 : i32
    return %c0_i32, %c0_i32_0 : i32, i32
  }
  func.func @transform_2(%arg0: i32) -> (i32, i32) {
    %c0_i32 = arith.constant 0 : i32
    %c0_i32_0 = arith.constant 0 : i32
    %c0_i32_1 = arith.constant 0 : i32
    return %c0_i32, %c0_i32_0 : i32, i32
  }
  func.func @transform_3(%arg0: i32) -> (i32, i32) {
    %c0_i32 = arith.constant 0 : i32
    %c0_i32_0 = arith.constant 0 : i32
    %c0_i32_1 = arith.constant 0 : i32
    return %c0_i32, %c0_i32_0 : i32, i32
  }
  func.func @transform_4(%arg0: i32) -> (i32, i32) {
    %c0_i32 = arith.constant 0 : i32
    %c0_i32_0 = arith.constant 0 : i32
    %c0_i32_1 = arith.constant 0 : i32
    return %c0_i32, %c0_i32_0 : i32, i32
  }
  func.func @transform_5(%arg0: i32) -> (i32, i32) {
    %c0_i32 = arith.constant 0 : i32
    %c0_i32_0 = arith.constant 0 : i32
    %c0_i32_1 = arith.constant 0 : i32
    return %c0_i32, %c0_i32_0 : i32, i32
  }
  func.func @transform_6(%arg0: i32) -> (i32, i32) {
    %c0_i32 = arith.constant 0 : i32
    %c0_i32_0 = arith.constant 0 : i32
    %c0_i32_1 = arith.constant 0 : i32
    return %c0_i32, %c0_i32_0 : i32, i32
  }
  func.func @transform_7(%arg0: i32) -> (i32, i32) {
    %c0_i32 = arith.constant 0 : i32
    %c0_i32_0 = arith.constant 0 : i32
    return %c0_i32, %arg0 : i32, i32
  }
}

</mosaic_0001>

<llo_original>
// kernel: tpu_custom_call.1
$region0: #{tpu_custom_call.1}
  #allocation0 [shape = 'u32[]', space=smem, size = 0x4, offset = 0x4, fixed_abs, tag = 'smem constant byte address 0x4 - core index']
  #allocation1 [shape = 'u32[144,128]{1,0:T(1,128)}', space=vmem, size = 0x12000, scoped, tag = 'internal scratch']
  %s0 = inlined_call_operand.vmem [shape: f32[256,32], index: 0, kind: input, shape index: {}]
  %s1 = inlined_call_operand.vmem [shape: bf16[16,32], index: 1, kind: input, shape index: {}]
  %s2 = inlined_call_operand.vmem [shape: f32[16,1], index: 2, kind: input, shape index: {}]
  %s3 = inlined_call_operand.vmem [shape: bf16[10,16], index: 3, kind: input, shape index: {}]
  %s4 = inlined_call_operand.vmem [shape: f32[10,1], index: 4, kind: input, shape index: {}]
  %s5 = inlined_call_operand.vmem [shape: bf16[2,10], index: 5, kind: input, shape index: {}]
  %s6 = inlined_call_operand.vmem [shape: f32[2,1], index: 6, kind: input, shape index: {}]
  %s7 = inlined_call_operand.hbm [shape: f32[2,256], index: 7, kind: output, shape index: {}]
  %s8 = sld [smem:[#allocation0]]
  $region61: #{tpu_custom_call.1} parent=0
    _
  %s10 = ssub.s32 1, %s8
  %s11 = scalar_select 0, %s10, %s8
  $region1: #{tpu_custom_call.1} parent=0
    #allocation2 [shape = 'u8[2048]{0}', space=vmem, size = 0x800, scoped, tag = 'output window, operand 0']
    #allocation3 [shape = 's32[2]{0}', space=sflag, size = 0x8, scoped, tag = 'scoped memory for tpu_custom_call.1']
    %12 = vsyncpa [#allocation3], 0
    %s13 = scalar_lea.sflag [#allocation3], 1
    %14 = vsyncpa %s13, 0
    loop: start=0, step=1, limit=4
    $region2: #{tpu_custom_call.1} parent=1 // loop_pre_header
      _
    $region3: #{tpu_custom_call.1} parent=1 // loop_header
      %s16 = sphi 0, %s20
      %p17 = scmp.ge.s32.totalorder %s16, 4
      %s26 = sphi 0, %s28
      %s29 = sphi 0, %s26
      %s30 = sphi 0, %s29
      %s46 = sphi 0, %s30
      %s50 = sphi 0, %s50
      %s52 = sphi 0, %s50
      %s53 = sphi 0, %s52
      %s67 = sphi 0, %s53
      %s71 = sphi 0, %s71
      %s73 = sphi 0, %s71
      %s74 = sphi 0, %s73
      %s88 = sphi 0, %s74
      %s92 = sphi 0, %s92
      %s94 = sphi 0, %s92
      %s95 = sphi 0, %s94
      %s109 = sphi 0, %s95
      %s113 = sphi 0, %s113
      %s115 = sphi 0, %s113
      %s116 = sphi 0, %s115
      %s130 = sphi 0, %s116
      %s134 = sphi 0, %s134
      %s136 = sphi 0, %s134
      %s137 = sphi 0, %s136
      %s151 = sphi 0, %s137
      %s155 = sphi 0, %s155
      %s157 = sphi 0, %s155
      %s158 = sphi 0, %s157
      %s172 = sphi 0, %s158
      %s178 = sphi 0, %s180
      %s181 = sphi 0, %s178
      %s182 = sphi 0, %s181
      %s198 = sphi 0, %s182
    $region4: #{tpu_custom_call.1} parent=1 // loop_header_branch
      %19 = sbr.rel (%p17) target = $region8
    $region5: #{tpu_custom_call.1} parent=1 // loop_body
      %s21 = ssub.s32 %s16, 1
      %s22 = ssub.s32 %s16, 2
      %s23 = sadd.s32 %s16, 1
      %s24 = ssub.s32 %s16, %s23
      %p25 = scmp.eq.s32.totalorder %s24, 0
      %s27 = sadd.s32 %s26, 1
      %s28 = scalar_select %p25, %s26, %s27
      %p31 = pneg %p25
      %p32 = scmp.eq.s32.totalorder %s16, 1
      %p33 = por %p31, %p32
      %p34 = scmp.ne.s32.totalorder %s26, %s29
      %p35 = scmp.eq.s32.totalorder %s16, 0
      %p36 = por %p34, %p35
      %p37 = scmp.ne.s32.totalorder %s26, %s29
      %p38 = scmp.eq.s32.totalorder %s21, 1
      %p39 = por %p37, %p38
      %p40 = scmp.ne.s32.totalorder %s29, %s30
      %p41 = scmp.eq.s32.totalorder %s21, 0
      %p42 = por %p40, %p41
      %p43 = scmp.ne.s32.totalorder %s29, %s30
      %p44 = scmp.eq.s32.totalorder %s22, 1
      %p45 = por %p43, %p44
      %p47 = scmp.ne.s32.totalorder %s30, %s46
      %p48 = scmp.eq.s32.totalorder %s22, 0
      %p49 = por %p47, %p48
      %s51 = sadd.s32 %s50, 1
      %p54 = scmp.eq.s32.totalorder %s16, 1
      %p55 = scmp.ne.s32.totalorder %s50, %s52
      %p56 = scmp.eq.s32.totalorder %s16, 0
      %p57 = por %p55, %p56
      %p58 = scmp.ne.s32.totalorder %s50, %s52
      %p59 = scmp.eq.s32.totalorder %s21, 1
      %p60 = por %p58, %p59
      %p61 = scmp.ne.s32.totalorder %s52, %s53
      %p62 = scmp.eq.s32.totalorder %s21, 0
      %p63 = por %p61, %p62
      %p64 = scmp.ne.s32.totalorder %s52, %s53
      %p65 = scmp.eq.s32.totalorder %s22, 1
      %p66 = por %p64, %p65
      %p68 = scmp.ne.s32.totalorder %s53, %s67
      %p69 = scmp.eq.s32.totalorder %s22, 0
      %p70 = por %p68, %p69
      %s72 = sadd.s32 %s71, 1
      %p75 = scmp.eq.s32.totalorder %s16, 1
      %p76 = scmp.ne.s32.totalorder %s71, %s73
      %p77 = scmp.eq.s32.totalorder %s16, 0
      %p78 = por %p76, %p77
      %p79 = scmp.ne.s32.totalorder %s71, %s73
      %p80 = scmp.eq.s32.totalorder %s21, 1
      %p81 = por %p79, %p80
      %p82 = scmp.ne.s32.totalorder %s73, %s74
      %p83 = scmp.eq.s32.totalorder %s21, 0
      %p84 = por %p82, %p83
      %p85 = scmp.ne.s32.totalorder %s73, %s74
      %p86 = scmp.eq.s32.totalorder %s22, 1
      %p87 = por %p85, %p86
      %p89 = scmp.ne.s32.totalorder %s74, %s88
      %p90 = scmp.eq.s32.totalorder %s22, 0
      %p91 = por %p89, %p90
      %s93 = sadd.s32 %s92, 1
      %p96 = scmp.eq.s32.totalorder %s16, 1
      %p97 = scmp.ne.s32.totalorder %s92, %s94
      %p98 = scmp.eq.s32.totalorder %s16, 0
      %p99 = por %p97, %p98
      %p100 = scmp.ne.s32.totalorder %s92, %s94
      %p101 = scmp.eq.s32.totalorder %s21, 1
      %p102 = por %p100, %p101
      %p103 = scmp.ne.s32.totalorder %s94, %s95
      %p104 = scmp.eq.s32.totalorder %s21, 0
      %p105 = por %p103, %p104
      %p106 = scmp.ne.s32.totalorder %s94, %s95
      %p107 = scmp.eq.s32.totalorder %s22, 1
      %p108 = por %p106, %p107
      %p110 = scmp.ne.s32.totalorder %s95, %s109
      %p111 = scmp.eq.s32.totalorder %s22, 0
      %p112 = por %p110, %p111
      %s114 = sadd.s32 %s113, 1
      %p117 = scmp.eq.s32.totalorder %s16, 1
      %p118 = scmp.ne.s32.totalorder %s113, %s115
      %p119 = scmp.eq.s32.totalorder %s16, 0
      %p120 = por %p118, %p119
      %p121 = scmp.ne.s32.totalorder %s113, %s115
      %p122 = scmp.eq.s32.totalorder %s21, 1
      %p123 = por %p121, %p122
      %p124 = scmp.ne.s32.totalorder %s115, %s116
      %p125 = scmp.eq.s32.totalorder %s21, 0
      %p126 = por %p124, %p125
      %p127 = scmp.ne.s32.totalorder %s115, %s116
      %p128 = scmp.eq.s32.totalorder %s22, 1
      %p129 = por %p127, %p128
      %p131 = scmp.ne.s32.totalorder %s116, %s130
      %p132 = scmp.eq.s32.totalorder %s22, 0
      %p133 = por %p131, %p132
      %s135 = sadd.s32 %s134, 1
      %p138 = scmp.eq.s32.totalorder %s16, 1
      %p139 = scmp.ne.s32.totalorder %s134, %s136
      %p140 = scmp.eq.s32.totalorder %s16, 0
      %p141 = por %p139, %p140
      %p142 = scmp.ne.s32.totalorder %s134, %s136
      %p143 = scmp.eq.s32.totalorder %s21, 1
      %p144 = por %p142, %p143
      %p145 = scmp.ne.s32.totalorder %s136, %s137
      %p146 = scmp.eq.s32.totalorder %s21, 0
      %p147 = por %p145, %p146
      %p148 = scmp.ne.s32.totalorder %s136, %s137
      %p149 = scmp.eq.s32.totalorder %s22, 1
      %p150 = por %p148, %p149
      %p152 = scmp.ne.s32.totalorder %s137, %s151
      %p153 = scmp.eq.s32.totalorder %s22, 0
      %p154 = por %p152, %p153
      %s156 = sadd.s32 %s155, 1
      %p159 = scmp.eq.s32.totalorder %s16, 1
      %p160 = scmp.ne.s32.totalorder %s155, %s157
      %p161 = scmp.eq.s32.totalorder %s16, 0
      %p162 = por %p160, %p161
      %p163 = scmp.ne.s32.totalorder %s155, %s157
      %p164 = scmp.eq.s32.totalorder %s21, 1
      %p165 = por %p163, %p164
      %p166 = scmp.ne.s32.totalorder %s157, %s158
      %p167 = scmp.eq.s32.totalorder %s21, 0
      %p168 = por %p166, %p167
      %p169 = scmp.ne.s32.totalorder %s157, %s158
      %p170 = scmp.eq.s32.totalorder %s22, 1
      %p171 = por %p169, %p170
      %p173 = scmp.ne.s32.totalorder %s158, %s172
      %p174 = scmp.eq.s32.totalorder %s22, 0
      %p175 = por %p173, %p174
      %s176 = ssub.s32 %s16, %s23
      %p177 = scmp.eq.s32.totalorder %s176, 0
      %s179 = sadd.s32 %s178, 1
      %s180 = scalar_select %p177, %s178, %s179
      %p183 = pneg %p177
      %p184 = scmp.eq.s32.totalorder %s16, 1
      %p185 = por %p183, %p184
      %p186 = scmp.ne.s32.totalorder %s178, %s181
      %p187 = scmp.eq.s32.totalorder %s16, 0
      %p188 = por %p186, %p187
      %p189 = scmp.ne.s32.totalorder %s178, %s181
      %p190 = scmp.eq.s32.totalorder %s21, 1
      %p191 = por %p189, %p190
      %p192 = scmp.ne.s32.totalorder %s181, %s182
      %p193 = scmp.eq.s32.totalorder %s21, 0
      %p194 = por %p192, %p193
      %p195 = scmp.ne.s32.totalorder %s181, %s182
      %p196 = scmp.eq.s32.totalorder %s22, 1
      %p197 = por %p195, %p196
      %p199 = scmp.ne.s32.totalorder %s182, %s198
      %p200 = scmp.eq.s32.totalorder %s22, 0
      %p201 = por %p199, %p200
      %p202 = scmp.le.s32.totalorder 1, %s16
      %p203 = scmp.lt.s32.totalorder %s16, 3
      %p204 = pnand %p202, %p203
      %p205 = pneg %p204
      // Predicated region
      $region9: #{tpu_custom_call.1} parent=5 // pred_check
        _
      $region10: #{tpu_custom_call.1} parent=5 // pred_check_branch
        %207 = sbr.rel (%p204) target = $region12
      $region11: #{tpu_custom_call.1} parent=5 // pred_region
        %s208 = ssub.s32 %s16, 1
        // Predicated region
        $region13: #{tpu_custom_call.1} parent=11 // pred_check
          %p209 = pneg %p63
        $region14: #{tpu_custom_call.1} parent=11 // pred_check_branch
          %211 = sbr.rel (%p209) target = $region16
        $region15: #{tpu_custom_call.1} parent=11 // pred_region
          _
        $region16: #{tpu_custom_call.1} parent=11 // pred_fallthru
          _
        // Predicated region
        $region17: #{tpu_custom_call.1} parent=11 // pred_check
          %p212 = pneg %p84
        $region18: #{tpu_custom_call.1} parent=11 // pred_check_branch
          %214 = sbr.rel (%p212) target = $region20
        $region19: #{tpu_custom_call.1} parent=11 // pred_region
          _
        $region20: #{tpu_custom_call.1} parent=11 // pred_fallthru
          _
        // Predicated region
        $region21: #{tpu_custom_call.1} parent=11 // pred_check
          %p215 = pneg %p105
        $region22: #{tpu_custom_call.1} parent=11 // pred_check_branch
          %217 = sbr.rel (%p215) target = $region24
        $region23: #{tpu_custom_call.1} parent=11 // pred_region
          _
        $region24: #{tpu_custom_call.1} parent=11 // pred_fallthru
          _
        // Predicated region
        $region25: #{tpu_custom_call.1} parent=11 // pred_check
          %p218 = pneg %p126
        $region26: #{tpu_custom_call.1} parent=11 // pred_check_branch
          %220 = sbr.rel (%p218) target = $region28
        $region27: #{tpu_custom_call.1} parent=11 // pred_region
          _
        $region28: #{tpu_custom_call.1} parent=11 // pred_fallthru
          _
        // Predicated region
        $region29: #{tpu_custom_call.1} parent=11 // pred_check
          %p221 = pneg %p147
        $region30: #{tpu_custom_call.1} parent=11 // pred_check_branch
          %223 = sbr.rel (%p221) target = $region32
        $region31: #{tpu_custom_call.1} parent=11 // pred_region
          _
        $region32: #{tpu_custom_call.1} parent=11 // pred_fallthru
          _
        // Predicated region
        $region33: #{tpu_custom_call.1} parent=11 // pred_check
          %p224 = pneg %p168
        $region34: #{tpu_custom_call.1} parent=11 // pred_check_branch
          %226 = sbr.rel (%p224) target = $region36
        $region35: #{tpu_custom_call.1} parent=11 // pred_region
          _
        $region36: #{tpu_custom_call.1} parent=11 // pred_fallthru
          _
      $region12: #{tpu_custom_call.1} parent=5 // pred_fallthru
        _
      %p227 = scmp.lt.s32.totalorder %s16, 2
      // Predicated region
      $region37: #{tpu_custom_call.1} parent=5 // pred_check
        %p228 = pneg %p227
      $region38: #{tpu_custom_call.1} parent=5 // pred_check_branch
        %230 = sbr.rel (%p228) target = $region40
      $region39: #{tpu_custom_call.1} parent=5 // pred_region
        // Predicated region
        $region41: #{tpu_custom_call.1} parent=39 // pred_check
          %p231 = pneg %p36
        $region42: #{tpu_custom_call.1} parent=39 // pred_check_branch
          %233 = sbr.rel (%p231) target = $region44
        $region43: #{tpu_custom_call.1} parent=39 // pred_region
          %s234 = smul.u32 16, %s16
          %p235 = scmp.lt.s32.totalorder %s234, 31
          %s236 = scalar_select %p235, %s234, 31
          %s237 = smul.addr %s236, 8
          %s238 = scalar_lea.vmem %s0, %s237
          %s239 = smul.u32 16, %s16
        $region44: #{tpu_custom_call.1} parent=39 // pred_fallthru
          _
      $region40: #{tpu_custom_call.1} parent=5 // pred_fallthru
        _
      %p240 = scmp.le.s32.totalorder 1, %s16
      %p241 = scmp.lt.s32.totalorder %s16, 3
      %p242 = pnand %p240, %p241
      %p243 = pneg %p242
      // Predicated region
      $region45: #{tpu_custom_call.1} parent=5 // pred_check
        _
      $region46: #{tpu_custom_call.1} parent=5 // pred_check_branch
        %245 = sbr.rel (%p242) target = $region48
      $region47: #{tpu_custom_call.1} parent=5 // pred_region
        %s246 = ssub.s32 %s16, 1
        %s247 = smul.u32 16, %s21
        %p248 = scmp.lt.s32.totalorder %s247, 31
        %s249 = scalar_select %p248, %s247, 31
        %s250 = smul.addr %s249, 8
        %s251 = scalar_lea.vmem %s0, %s250
        %p252 = pneg %p42
        %p253 = pneg %p39
        %p254 = pneg %p63
        %p255 = pneg %p60
        %p256 = pneg %p84
        %p257 = pneg %p81
        %p258 = pneg %p105
        %p259 = pneg %p102
        %p260 = pneg %p126
        %p261 = pneg %p123
        %p262 = pneg %p147
        %p263 = pneg %p144
        %p264 = pneg %p168
        %p265 = pneg %p165
        %p266 = pneg %p194
        %p267 = pneg %p191
        %s268 = sand.u32 %s181, 1
        %s269 = scalar_lea.sflag [#allocation3], %s268
        %s270 = sand.u32 %s181, 1
        %s271 = smul.addr %s270, 2
        %s272 = scalar_lea.vmem [#allocation2], %s271
        %s273 = smul.u32 16, %s21
        %p274 = scmp.lt.s32.totalorder %s273, 31
        %s275 = scalar_select %p274, %s273, 31
        %s276 = smul.addr %s275, 8
        %s277 = scalar_lea.vmem %s0, %s276
        %s278 = smul.u32 16, %s21
        %v280 = vld [vmem:[%s277] sm:$0xff]
        %v281 = vld [vmem:[%s277 + $0x8] sm:$0xff]
        %v282 = vld [vmem:[%s277 + $0x10] sm:$0xff]
        %v283 = vld [vmem:[%s277 + $0x18] sm:$0xff]
        %v284 = vld [vmem:[%s277 + $0x20] sm:$0xff]
        %v285 = vld [vmem:[%s277 + $0x28] sm:$0xff]
        %v286 = vld [vmem:[%s277 + $0x30] sm:$0xff]
        %v287 = vld [vmem:[%s277 + $0x38] sm:$0xff]
        %v288 = vld [vmem:[%s277 + $0x40] sm:$0xff]
        %v289 = vld [vmem:[%s277 + $0x48] sm:$0xff]
        %v290 = vld [vmem:[%s277 + $0x50] sm:$0xff]
        %v291 = vld [vmem:[%s277 + $0x58] sm:$0xff]
        %v292 = vld [vmem:[%s277 + $0x60] sm:$0xff]
        %v293 = vld [vmem:[%s277 + $0x68] sm:$0xff]
        %v294 = vld [vmem:[%s277 + $0x70] sm:$0xff]
        %v295 = vld [vmem:[%s277 + $0x78] sm:$0xff]
        %v296 = vpack.c.bf16 %v281, %v280
        %v297 = vpack.c.bf16 %v283, %v282
        %v298 = vpack.c.bf16 %v285, %v284
        %v299 = vpack.c.bf16 %v287, %v286
        %v300 = vpack.c.bf16 %v289, %v288
        %v301 = vpack.c.bf16 %v291, %v290
        %v302 = vpack.c.bf16 %v293, %v292
        %v303 = vpack.c.bf16 %v295, %v294
        %v304 = vld [vmem:[%s1] sm:$0xf]
        %v305 = vld [vmem:[%s1 + $0x4] sm:$0xf]
        %v306 = vld [vmem:[%s2] sm:$0xff]
        %v307 = vld [vmem:[%s2 + $0x8] sm:$0xff]
        %309 = vset.pattern.permute.xlu0 0
        %310 = vperm.xlu0 %309, %v306
        %v311 = vpop.permute.xlu0 %310
        %314 = vset.pattern.permute.xlu0 0
        %315 = vperm.xlu0 %314, %v307
        %v316 = vpop.permute.xlu0 %315
        %v320 = vunpack.c.l.b16 %v304
        %v321 = vunpack.c.l.b16 %v305
        %v322 = vpack.c.b16 %v321, %v320
        %vm323 = vcmask 261120
        %v325 = vsel %vm323, %v322, 0
        %v328 = vsel %vm323, %v296, 0
        %v331 = vsel %vm323, %v297, 0
        %v334 = vsel %vm323, %v298, 0
        %v337 = vsel %vm323, %v299, 0
        %v340 = vsel %vm323, %v300, 0
        %v343 = vsel %vm323, %v301, 0
        %v346 = vsel %vm323, %v302, 0
        %v349 = vsel %vm323, %v303, 0
        %351 = vmatprep.subr.bf16.mxu0 0
        %352 = vmatpush1.bf16.xpose.msra.mxu0 %v349
        %353 = vmatprep.subr.bf16.mxu0 0
        %354 = vmatpush1.bf16.xpose.msra.mxu0 %v346
        %355 = vmatprep.subr.bf16.mxu0 0
        %356 = vmatpush1.bf16.xpose.msra.mxu0 %v343
        %357 = vmatprep.subr.bf16.mxu0 0
        %358 = vmatpush1.bf16.xpose.msra.mxu0 %v340
        %359 = vmatprep.subr.bf16.mxu0 0
        %360 = vmatpush1.bf16.xpose.msra.mxu0 %v337
        %361 = vmatprep.subr.bf16.mxu0 0
        %362 = vmatpush1.bf16.xpose.msra.mxu0 %v334
        %363 = vmatprep.subr.bf16.mxu0 0
        %364 = vmatpush1.bf16.xpose.msra.mxu0 %v331
        %365 = vmatprep.subr.bf16.mxu0 0
        %366 = vmatpush1.bf16.xpose.msra.mxu0 %v328
        %367 = vmatprep.subr.bf16.mxu0 0
        %368 = vmatpush2.bf16.xpose.msra.mxu0 0
        %369 = vmatprep.subr.bf16.mxu0 0
        %370 = vmatpush2.bf16.xpose.msra.mxu0 0
        %371 = vmatprep.subr.bf16.mxu0 0
        %372 = vmatpush2.bf16.xpose.msra.mxu0 0
        %373 = vmatprep.subr.bf16.mxu0 0
        %374 = vmatpush2.bf16.xpose.msra.mxu0 0
        %375 = vmatprep.subr.bf16.mxu0 0
        %376 = vmatpush2.bf16.xpose.msra.mxu0 0
        %377 = vmatprep.subr.bf16.mxu0 0
        %378 = vmatpush2.bf16.xpose.msra.mxu0 0
        %379 = vmatprep.subr.bf16.mxu0 0
        %380 = vmatpush2.bf16.xpose.msra.mxu0 0
        %381 = vmatprep.subr.bf16.mxu0 0
        %382 = vmatpush2.bf16.xpose.msra.mxu0 0
        %383 = vmatprep.mubr.bf16.mxu0 0
        %384 = vmatmul.mubr.bf16.gmra.mxu0 %v325
        %v385 = vpop.f32.mrf.mxu0
        %v386 = vadd.f32 %v311, %v385
        %v387 = vpop.f32.mrf.mxu0
        %v388 = vpop.f32.mrf.mxu0
        %v389 = vadd.f32 %v316, %v388
        %v390 = vpop.f32.mrf.mxu0
        %391 = vdwg.mxu0
        %v392 = vmax.f32 %v386, 0.0
        %v393 = vmax.f32 %v389, 0.0
        %v394 = vld [vmem:[%s3] sm:$0xf]
        %v395 = vld [vmem:[%s3 + $0x4] sm:$0x1]
        %v396 = vpack.c.bf16 %v393, %v392
        %v397 = vld [vmem:[%s4] sm:$0xff]
        %v398 = vld [vmem:[%s4 + $0x8] sm:$0x3]
        %400 = vset.pattern.permute.xlu0 0
        %401 = vperm.xlu0 %400, %v397
        %v402 = vpop.permute.xlu0 %401
        %405 = vset.pattern.permute.xlu0 0
        %406 = vperm.xlu0 %405, %v398
        %v407 = vpop.permute.xlu0 %406
        %v411 = vunpack.c.l.b16 %v394
        %v412 = vunpack.c.l.b16 %v395
        %v413 = vpack.c.b16 %v412, %v411
        %vm414 = vcmask 130048
        %v416 = vsel %vm414, %v413, 0
        %418 = vmatprep.subr.bf16.mxu0 0
        %419 = vmatpush1.bf16.msra.mxu0 0
        %420 = vmatprep.subr.bf16.mxu0 0
        %421 = vmatpush1.bf16.msra.mxu0 0
        %422 = vmatprep.subr.bf16.mxu0 0
        %423 = vmatpush1.bf16.msra.mxu0 0
        %424 = vmatprep.subr.bf16.mxu0 0
        %425 = vmatpush1.bf16.msra.mxu0 0
        %426 = vmatprep.subr.bf16.mxu0 0
        %427 = vmatpush1.bf16.msra.mxu0 0
        %428 = vmatprep.subr.bf16.mxu0 0
        %429 = vmatpush1.bf16.msra.mxu0 0
        %430 = vmatprep.subr.bf16.mxu0 0
        %431 = vmatpush1.bf16.msra.mxu0 0
        %432 = vmatprep.subr.bf16.mxu0 0
        %433 = vmatpush1.bf16.msra.mxu0 %v396
        %434 = vmatprep.subr.bf16.mxu0 0
        %435 = vmatpush2.bf16.msra.mxu0 0
        %436 = vmatprep.subr.bf16.mxu0 0
        %437 = vmatpush2.bf16.msra.mxu0 0
        %438 = vmatprep.subr.bf16.mxu0 0
        %439 = vmatpush2.bf16.msra.mxu0 0
        %440 = vmatprep.subr.bf16.mxu0 0
        %441 = vmatpush2.bf16.msra.mxu0 0
        %442 = vmatprep.subr.bf16.mxu0 0
        %443 = vmatpush2.bf16.msra.mxu0 0
        %444 = vmatprep.subr.bf16.mxu0 0
        %445 = vmatpush2.bf16.msra.mxu0 0
        %446 = vmatprep.subr.bf16.mxu0 0
        %447 = vmatpush2.bf16.msra.mxu0 0
        %448 = vmatprep.subr.bf16.mxu0 0
        %449 = vmatpush2.bf16.msra.mxu0 0
        %450 = vmatprep.mubr.bf16.mxu0 0
        %451 = vmatmul.mubr.bf16.gmra.mxu0 %v416
        %v452 = vpop.f32.mrf.mxu0
        %v453 = vadd.f32 %v402, %v452
        %v454 = vpop.f32.mrf.mxu0
        %v455 = vpop.f32.mrf.mxu0
        %v456 = vadd.f32 %v407, %v455
        %v457 = vpop.f32.mrf.mxu0
        %458 = vdwg.mxu0
        %v459 = vmax.f32 %v453, 0.0
        %v460 = vmax.f32 %v456, 0.0
        %v461 = vld [vmem:[%s5] sm:$0x1]
        %v462 = vpack.c.bf16 %v460, %v459
        %v463 = vld [vmem:[%s6] sm:$0x3]
        %465 = vset.pattern.permute.xlu0 0
        %466 = vperm.xlu0 %465, %v463
        %v467 = vpop.permute.xlu0 %466
        %vm469 = vcmask 80896
        %v471 = vsel %vm469, %v461, 0
        %vm473 = vcmask 1044480
        %v475 = vsel %vm473, %v462, 0
        %477 = vmatprep.subr.bf16.mxu0 0
        %478 = vmatpush1.bf16.msra.mxu0 0
        %479 = vmatprep.subr.bf16.mxu0 0
        %480 = vmatpush1.bf16.msra.mxu0 0
        %481 = vmatprep.subr.bf16.mxu0 0
        %482 = vmatpush1.bf16.msra.mxu0 0
        %483 = vmatprep.subr.bf16.mxu0 0
        %484 = vmatpush1.bf16.msra.mxu0 0
        %485 = vmatprep.subr.bf16.mxu0 0
        %486 = vmatpush1.bf16.msra.mxu0 0
        %487 = vmatprep.subr.bf16.mxu0 0
        %488 = vmatpush1.bf16.msra.mxu0 0
        %489 = vmatprep.subr.bf16.mxu0 0
        %490 = vmatpush1.bf16.msra.mxu0 0
        %491 = vmatprep.subr.bf16.mxu0 0
        %492 = vmatpush1.bf16.msra.mxu0 %v475
        %493 = vmatprep.subr.bf16.mxu0 0
        %494 = vmatpush2.bf16.msra.mxu0 0
        %495 = vmatprep.subr.bf16.mxu0 0
        %496 = vmatpush2.bf16.msra.mxu0 0
        %497 = vmatprep.subr.bf16.mxu0 0
        %498 = vmatpush2.bf16.msra.mxu0 0
        %499 = vmatprep.subr.bf16.mxu0 0
        %500 = vmatpush2.bf16.msra.mxu0 0
        %501 = vmatprep.subr.bf16.mxu0 0
        %502 = vmatpush2.bf16.msra.mxu0 0
        %503 = vmatprep.subr.bf16.mxu0 0
        %504 = vmatpush2.bf16.msra.mxu0 0
        %505 = vmatprep.subr.bf16.mxu0 0
        %506 = vmatpush2.bf16.msra.mxu0 0
        %507 = vmatprep.subr.bf16.mxu0 0
        %508 = vmatpush2.bf16.msra.mxu0 0
        %509 = vmatprep.mubr.bf16.mxu0 0
        %510 = vmatmul.mubr.bf16.gmra.mxu0 %v471
        %v511 = vpop.f32.mrf.mxu0
        %v512 = vadd.f32 %v467, %v511
        %v513 = vpop.f32.mrf.mxu0
        %v514 = vpop.f32.mrf.mxu0
        %v515 = vpop.f32.mrf.mxu0
        %516 = vdwg.mxu0
        %vm517 = vcmask 1041408
        %v518 = vsel %vm517, %v512, -inf
        %v519 = vrot.slane %v518, 4
        %v520 = vmax.f32 %v518, %v519
        %v521 = vrot.slane %v520, 2
        %v522 = vmax.f32 %v520, %v521
        %v523 = vrot.slane %v522, 1
        %v524 = vmax.f32 %v522, %v523
        %v525 = vsub.f32 %v512, %v524
        %v526 = vmul.f32 %v525, 1.442695
        %v527 = vpow.pop %v526
        %v528 = vsel %vm517, %v527, 0.0
        %v529 = vrot.slane %v528, 4
        %v530 = vadd.f32 %v528, %v529
        %v531 = vrot.slane %v530, 2
        %v532 = vadd.f32 %v530, %v531
        %v533 = vrot.slane %v532, 1
        %v534 = vadd.f32 %v532, %v533
        %v535 = vrcp.pop %v534
        %v536 = vmul.f32 %v527, %v535
        %537 = vst [vmem:[%s272] sm:$0x3] %v536
        %s538 = sand.u32 %s181, 1
        %s539 = scalar_lea.sflag [#allocation3], %s538
        %s540 = sand.u32 %s181, 1
        %s541 = smul.addr %s540, 2
        %s542 = scalar_lea.vmem [#allocation2], %s541
        // Predicated region
        $region49: #{tpu_custom_call.1} parent=47 // pred_check
          %p543 = pneg %p191
        $region50: #{tpu_custom_call.1} parent=47 // pred_check_branch
          %545 = sbr.rel (%p543) target = $region52
        $region51: #{tpu_custom_call.1} parent=47 // pred_region
          %s547 = ssub.s32 32, 32
          %548 = vsyncadd %s539, %s547
          %s549 = smul.addr %s21, 32
          %s550 = scalar_lea.hbm %s7, %s549
          %s552 = sshll.u32 %s542, 4
          %s553 = int_to_ptr.vmem [resolvable:$true] %s552
          %555 = dma.vmem_to_hbm [thread:$0]  %s553, 32, %s550, %s539
        $region52: #{tpu_custom_call.1} parent=47 // pred_fallthru
          _
      $region48: #{tpu_custom_call.1} parent=5 // pred_fallthru
        _
      %p556 = scmp.le.s32.totalorder 2, %s16
      // Predicated region
      $region53: #{tpu_custom_call.1} parent=5 // pred_check
        %p557 = pneg %p556
      $region54: #{tpu_custom_call.1} parent=5 // pred_check_branch
        %559 = sbr.rel (%p557) target = $region56
      $region55: #{tpu_custom_call.1} parent=5 // pred_region
        %s560 = ssub.s32 %s16, 2
        // Predicated region
        $region57: #{tpu_custom_call.1} parent=55 // pred_check
          %p561 = pneg %p197
        $region58: #{tpu_custom_call.1} parent=55 // pred_check_branch
          %563 = sbr.rel (%p561) target = $region60
        $region59: #{tpu_custom_call.1} parent=55 // pred_region
          %s564 = sand.u32 %s182, 1
          %s565 = scalar_lea.sflag [#allocation3], %s564
          %s566 = sand.u32 %s182, 1
          %s567 = smul.addr %s566, 2
          %s568 = scalar_lea.vmem [#allocation2], %s567
          %569 = dma.done %s565, 32
        $region60: #{tpu_custom_call.1} parent=55 // pred_fallthru
          _
      $region56: #{tpu_custom_call.1} parent=5 // pred_fallthru
        _
    $region6: #{tpu_custom_call.1} parent=1 // loop_footer
      %s20 = sadd.s32 1, %s16
    $region7: #{tpu_custom_call.1} parent=1 // loop_footer_branch
      %15 = sbr.rel target = $region3
    $region8: #{tpu_custom_call.1} parent=1 // loop_exit
      _
    %570 = vsyncpa [#allocation3], 1
    %s571 = scalar_lea.sflag [#allocation3], 1
    %572 = vsyncpa %s571, 1

</llo_original>
